<compile_context>
chip_gen: v7x
topology: tpu7x:2x2x1
jax: 0.10.0
libtpu: 0.0.40
codegen_flags: <defaults>
</compile_context>

<pallas_src>
import math

import jax
import jax.numpy as jnp
from jax import lax
from jax.experimental import pallas as pl
from jax.experimental.pallas import tpu as pltpu

LN_EPS = 1e-12


# ------------------------------------------------------------------ helpers

def _round_up(x, m):
    return (x + m - 1) // m * m


def _tpu_defaults():
    """Generation-aware tile sizes / VMEM limit.

    v5e/v6e have 128 MiB VMEM and need a large row tile (~768) to hide decoder
    weight streaming; v7x-class parts have 64 MiB/TC but ~2.3x the HBM BW, so a
    smaller row tile already reaches the roofline and the VMEM limit must be
    re-derived for the smaller physical budget.
    """
    vmem_bytes = 128 * 1024 * 1024
    try:
        get_info = getattr(pltpu, "get_tpu_info", None)
        if get_info is not None:
            vmem_bytes = int(getattr(get_info(), "vmem_capacity_bytes",
                                     vmem_bytes))
    except Exception:
        pass
    if vmem_bytes <= 64 * 1024 * 1024:                       # v7x-class
        return {"tm": 512, "tn": 1024,
                "vmem_limit": min(40 * 1024 * 1024, int(vmem_bytes * 0.6))}
    return {"tm": 768, "tn": 1024,                           # v5e / v6e-class
            "vmem_limit": 64 * 1024 * 1024}


_DEFAULTS = _tpu_defaults()

_CP_1D = pltpu.CompilerParams(dimension_semantics=("parallel",),
                              vmem_limit_bytes=_DEFAULTS["vmem_limit"])
# The vocab axis MUST remain the innermost grid axis and MUST remain
# "arbitrary": head_kernel caches the row-tile transform in a VMEM scratch at
# j == 0 and reuses it for every j > 0.  Do not reorder / parallelize it.
_CP_2D = pltpu.CompilerParams(dimension_semantics=("parallel", "arbitrary"),
                              vmem_limit_bytes=_DEFAULTS["vmem_limit"])


def _row_tile(n, tm, min_rows=128):
    """Row tile size + padded row count.  Rows are padded to >= min_rows so the
    MXU's M dimension is reasonably filled even for tiny inputs; pads are
    sliced off by the wrappers."""
    n_min = _round_up(max(n, min_rows), 8)
    tm_eff = min(_round_up(tm, 8), n_min)
    return tm_eff, _round_up(n_min, tm_eff)


def _pick_decoder_tile(v, tn_max, max_rel_waste=0.04):
    """Choose (tn_eff, v_pad): both multiples of 128, tn_eff | v_pad, padding
    waste bounded.  Small heads (<= tn_max) get a single lane-dense column
    tile; e.g. the 1601-class image head pads to 1664 (2 x 832), NOT 2048."""
    v128 = _round_up(v, 128)
    if v128 <= tn_max:
        return v128, v128
    for t in range(tn_max, 127, -128):
        pad = _round_up(v, t)
        if pad - v128 <= max_rel_waste * v128:
            return t, pad
    return 128, v128


def _gelu(x):
    # exact (erf-based) gelu, matching the PyTorch reference
    return x * 0.5 * (1.0 + lax.erf(x / math.sqrt(2.0)))


def _transform_rows(x, wd_t, bd, gamma, beta):
    """dense -> gelu -> LayerNorm on a [tm, H] row tile; returns f32.

    x: [tm, H] bf16; wd_t: [H, H] bf16 (pre-transposed, [in, out]);
    bd/gamma/beta: [1, H] f32.
    """
    h = jnp.dot(x.astype(jnp.bfloat16), wd_t,
                preferred_element_type=jnp.float32) + bd
    h = _gelu(h)
    mu = jnp.mean(h, axis=-1, keepdims=True)
    var = jnp.mean(jnp.square(h - mu), axis=-1, keepdims=True)
    h = (h - mu) * lax.rsqrt(var + LN_EPS)
    return h * gamma + beta


# ------------------------------------------------------------------ kernels

def transform_kernel(x_ref, wd_ref, bd_ref, g_ref, b_ref, o_ref):
    """BertPredictionHeadTransform (the spec module) on one [tm, H] row tile."""
    o_ref[...] = _transform_rows(x_ref[...], wd_ref[...], bd_ref[...],
                                 g_ref[...], b_ref[...]).astype(o_ref.dtype)


def head_kernel(x_ref, wd_ref, bd_ref, g_ref, b_ref, wdec_ref, bdec_ref,
                o_ref, h_ref):
    """Fused transform + decoder Linear, grid = (row tile i, vocab tile j).

    The transform of the row tile is computed once (at j == 0) into the VMEM
    scratch h_ref (bf16) and reused for every decoder column tile j.  This is
    only valid because j is the innermost, "arbitrary" grid axis.
    """
    # TODO(synk): the j-invariant wd/bd/gamma/beta operands are still
    # double-buffered by the default pipeline; on v7x (64 MiB VMEM) they could
    # be marked pipeline_mode=pl.Buffered(1) or hoisted into run_transform.
    @pl.when(pl.program_id(1) == 0)
    def _():
        h = _transform_rows(x_ref[...], wd_ref[...], bd_ref[...],
                            g_ref[...], b_ref[...])
        h_ref[...] = h.astype(jnp.bfloat16)

    o_ref[...] = (jnp.dot(h_ref[...], wdec_ref[...],
                          preferred_element_type=jnp.float32)
                  + bdec_ref[...]).astype(o_ref.dtype)


# ------------------------------------------------------------------ wrappers

def run_transform(x2d, head, *, tm=None, out_dtype=jnp.float32):
    """BertPredictionHeadTransform over [N, H] rows -> [N, H]."""
    n, hdim = x2d.shape
    tm = _DEFAULTS["tm"] if tm is None else tm
    tm_eff, n_pad = _row_tile(n, tm)
    x2d = x2d.astype(jnp.bfloat16)                 # halve activation HBM stream
    if n_pad != n:
        x2d = jnp.pad(x2d, ((0, n_pad - n), (0, 0)))
    out = pl.pallas_call(
        transform_kernel,
        out_shape=jax.ShapeDtypeStruct((n_pad, hdim), out_dtype),
        grid=(n_pad // tm_eff,),
        in_specs=[
            pl.BlockSpec((tm_eff, hdim), lambda i: (i, 0)),   # x row tile (bf16)
            pl.BlockSpec((hdim, hdim),   lambda i: (0, 0)),   # dense W^T (bf16)
            pl.BlockSpec((1, hdim),      lambda i: (0, 0)),   # dense bias
            pl.BlockSpec((1, hdim),      lambda i: (0, 0)),   # LN gamma
            pl.BlockSpec((1, hdim),      lambda i: (0, 0)),   # LN beta
        ],
        out_specs=pl.BlockSpec((tm_eff, hdim), lambda i: (i, 0)),
        compiler_params=_CP_1D,
    )(x2d, head["wd_t"], head["bd"], head["gamma"], head["beta"])
    return out[:n]


def run_head(x2d, head, *, tm=None, out_dtype=jnp.float32):
    """transform + decoder:  [N, H] -> [N, v_out] logits.

    The decoder column tile (tn) and padded vocab width are the ones chosen at
    prepare_params time (stored with the weights), so there is no wrapper/prep
    coupling to keep in sync.
    """
    n, hdim = x2d.shape
    tm = _DEFAULTS["tm"] if tm is None else tm
    v_pad = head["wdec_t"].shape[1]
    tn_eff = head["tn"]
    v_out = head["v_out"]
    tm_eff, n_pad = _row_tile(n, tm)
    # TODO(synk): on v7x (2 TCs) cap tm so n_pad // tm_eff >= 2 for short
    # sequences, or split transform/decoder into two calls with both axes
    # "parallel" on the decoder; on 1-TC chips (v5e/v6e) that only hurts.
    x2d = x2d.astype(jnp.bfloat16)                 # halve activation HBM stream
    if n_pad != n:
        x2d = jnp.pad(x2d, ((0, n_pad - n), (0, 0)))
    out = pl.pallas_call(
        head_kernel,
        out_shape=jax.ShapeDtypeStruct((n_pad, v_pad), out_dtype),
        grid=(n_pad // tm_eff, v_pad // tn_eff),
        in_specs=[
            pl.BlockSpec((tm_eff, hdim), lambda i, j: (i, 0)),   # x row tile (bf16)
            pl.BlockSpec((hdim, hdim),   lambda i, j: (0, 0)),   # dense W^T (bf16)
            pl.BlockSpec((1, hdim),      lambda i, j: (0, 0)),   # dense bias
            pl.BlockSpec((1, hdim),      lambda i, j: (0, 0)),   # LN gamma
            pl.BlockSpec((1, hdim),      lambda i, j: (0, 0)),   # LN beta
            pl.BlockSpec((hdim, tn_eff), lambda i, j: (0, j)),   # decoder W^T tile
            pl.BlockSpec((1, tn_eff),    lambda i, j: (0, j)),   # decoder bias tile
        ],
        out_specs=pl.BlockSpec((tm_eff, tn_eff), lambda i, j: (i, j)),
        scratch_shapes=[pltpu.VMEM((tm_eff, hdim), jnp.bfloat16)],
        compiler_params=_CP_2D,
    )(x2d, head["wd_t"], head["bd"], head["gamma"], head["beta"],
      head["wdec_t"], head["bdec"])
    return out[:n, :v_out]


def prepare_params(params, *, tn=None):
    """One-time (load-time) prep: transpose to [in, out], cast matmul weights to
    bf16, lane-pad decoder columns with a waste-minimizing tile, reshape vectors
    to [1, H].  No per-forward transposes remain."""
    f32 = jnp.float32
    tn = _DEFAULTS["tn"] if tn is None else tn

    def _head(wd, bd, gamma, beta, wdec, bdec):
        v = wdec.shape[0]
        tn_eff, v_pad = _pick_decoder_tile(v, tn)
        return {
            "wd_t": wd.T.astype(jnp.bfloat16),
            "bd": bd.astype(f32)[None, :],
            "gamma": gamma.astype(f32)[None, :],
            "beta": beta.astype(f32)[None, :],
            "wdec_t": jnp.pad(wdec.astype(jnp.bfloat16).T,
                              ((0, 0), (0, v_pad - v))),
            "bdec": jnp.pad(bdec.astype(f32), (0, v_pad - v))[None, :],
            "v_out": v,
            "tn": tn_eff,
        }

    return {
        "lm": _head(params["lm_transform_w"], params["lm_transform_b"],
                    params["lm_ln_gamma"], params["lm_ln_beta"],
                    params["embedding_w"], params["lm_bias"]),
        "img": _head(params["img_transform_w"], params["img_transform_b"],
                     params["img_ln_gamma"], params["img_ln_beta"],
                     params["img_decoder_w"], params["img_decoder_b"]),
        # seq_relationship stays in plain JAX (output width 2: pallas_call
        # overhead + masked 2-lane stores dwarf that tiny GEMV).
        "seq_rel_w_t": params["seq_rel_w"].T.astype(f32),
        "seq_rel_b": params["seq_rel_b"].astype(f32),
    }


def bert_prediction_head_transform(hidden_states, head, *, tm=None):
    """The spec module: dense -> gelu -> LayerNorm on [B, S, H]."""
    b, s, hdim = hidden_states.shape
    out = run_transform(hidden_states.reshape(b * s, hdim), head, tm=tm)
    return out.reshape(b, s, hdim)


def bert_pretraining_heads(sequence_output_t, sequence_output_v, pooled_output,
                           dev_params, *, tm=None, logits_dtype=jnp.float32):
    """Mirrors BertPreTrainingHeads.forward; returns
    (img_prediction_scores, prediction_scores, seq_relationship_score).
    Pass logits_dtype=jnp.bfloat16 to halve the logit HBM writeback when the
    downstream loss tolerates it."""
    b, st_len, hdim = sequence_output_t.shape
    _, sv_len, _ = sequence_output_v.shape

    pred = run_head(sequence_output_t.reshape(b * st_len, hdim),
                    dev_params["lm"], tm=tm, out_dtype=logits_dtype)
    img = run_head(sequence_output_v.reshape(b * sv_len, hdim),
                   dev_params["img"], tm=tm, out_dtype=logits_dtype)
    # tiny 2-wide head: plain JAX (XLA handles the GEMV fine)
    seq = pooled_output @ dev_params["seq_rel_w_t"] + dev_params["seq_rel_b"]

    return (img.reshape(b, sv_len, -1), pred.reshape(b, st_len, -1), seq)


# ------------------------------------------------------------------ pure-JAX reference

def _ref_transform(x, w, b, g, be):
    h = x @ w.T + b
    h = h * 0.5 * (1.0 + lax.erf(h / math.sqrt(2.0)))
    mu = jnp.mean(h, axis=-1, keepdims=True)
    var = jnp.mean((h - mu) ** 2, axis=-1, keepdims=True)
    return ((h - mu) / jnp.sqrt(var + LN_EPS)) * g + be


def _ref_forward(st, sv, pooled, p):
    hv = _ref_transform(sv, p["img_transform_w"], p["img_transform_b"],
                        p["img_ln_gamma"], p["img_ln_beta"])
    img = hv @ p["img_decoder_w"].T + p["img_decoder_b"]
    ht = _ref_transform(st, p["lm_transform_w"], p["lm_transform_b"],
                        p["lm_ln_gamma"], p["lm_ln_beta"])
    pred = ht @ p["embedding_w"].T + p["lm_bias"]
    seq = pooled @ p["seq_rel_w"].T + p["seq_rel_b"]
    return img, pred, seq


# ------------------------------------------------------------------ main

if __name__ == "__main__":
    B, S_T, S_V, H = 2, 8, 8, 32
    VOCAB = 64
    IMG_CLASSES = 1601  # fixed in BertImagePredictionHead

    key = jax.random.PRNGKey(0)
    ks = jax.random.split(key, 12)

    def nrm(k, shape, scale=0.02):
        return (scale * jax.random.normal(k, shape)).astype(jnp.float32)

    params = {
        # BertLMPredictionHead (transform + tied-embedding decoder + bias)
        "lm_transform_w": nrm(ks[0], (H, H)),
        "lm_transform_b": nrm(ks[1], (H,)),
        "lm_ln_gamma": jnp.ones((H,), jnp.float32),
        "lm_ln_beta": jnp.zeros((H,), jnp.float32),
        "embedding_w": nrm(ks[2], (VOCAB, H)),
        "lm_bias": jnp.zeros((VOCAB,), jnp.float32),
        # BertImagePredictionHead
        "img_transform_w": nrm(ks[3], (H, H)),
        "img_transform_b": nrm(ks[4], (H,)),
        "img_ln_gamma": jnp.ones((H,), jnp.float32),
        "img_ln_beta": jnp.zeros((H,), jnp.float32),
        "img_decoder_w": nrm(ks[5], (IMG_CLASSES, H)),
        "img_decoder_b": nrm(ks[6], (IMG_CLASSES,)),
        # seq_relationship
        "seq_rel_w": nrm(ks[7], (2, H)),
        "seq_rel_b": nrm(ks[8], (2,)),
    }

    sequence_output_t = nrm(ks[9], (B, S_T, H), scale=1.0)
    sequence_output_v = nrm(ks[10], (B, S_V, H), scale=1.0)
    pooled_output = nrm(ks[11], (B, H), scale=1.0)

    dev = prepare_params(params)  # one-time transposes / bf16 casts / padding

    # the 1601-class img head must pad to 1664 (13*128), not 2048
    assert dev["img"]["wdec_t"].shape[1] == 1664
    assert dev["img"]["wdec_t"].shape[1] % dev["img"]["tn"] == 0

    # 1) the spec module on its own
    t_out = bert_prediction_head_transform(sequence_output_t, dev["lm"])
    # 2) the full pretraining heads (previous scope kept; review targets these)
    img_scores, pred_scores, seq_scores = bert_pretraining_heads(
        sequence_output_t, sequence_output_v, pooled_output, dev)
    jax.block_until_ready((t_out, img_scores, pred_scores, seq_scores))

    # shape checks
    assert t_out.shape == (B, S_T, H)
    assert img_scores.shape == (B, S_V, IMG_CLASSES)
    assert pred_scores.shape == (B, S_T, VOCAB)
    assert seq_scores.shape == (B, 2)

    # numeric checks vs. pure-f32 PyTorch-semantics reference (kernel uses bf16
    # MXU operands / bf16 intermediate with f32 accumulation -> relaxed tolerance)
    ref_t = _ref_transform(sequence_output_t, params["lm_transform_w"],
                           params["lm_transform_b"], params["lm_ln_gamma"],
                           params["lm_ln_beta"])
    ref_img, ref_pred, ref_seq = _ref_forward(
        sequence_output_t, sequence_output_v, pooled_output, params)

    assert jnp.allclose(t_out, ref_t, rtol=5e-2, atol=5e-2)
    assert jnp.allclose(img_scores, ref_img, rtol=5e-2, atol=5e-2)
    assert jnp.allclose(pred_scores, ref_pred, rtol=5e-2, atol=5e-2)
    assert jnp.allclose(seq_scores, ref_seq, rtol=1e-5, atol=1e-5)
    assert not bool(jnp.any(jnp.isnan(pred_scores)))

    print("KERNEL_OK")
</pallas_src>

<mosaic_0001>
module attributes {stable_mosaic.version = 11 : i64} {
  func.func @transform_kernel(%arg0: i32, %arg1: memref<128x32xbf16, #tpu.memory_space<vmem>>, %arg2: memref<32x32xbf16, #tpu.memory_space<vmem>>, %arg3: memref<1x32xf32, #tpu.memory_space<vmem>>, %arg4: memref<1x32xf32, #tpu.memory_space<vmem>>, %arg5: memref<1x32xf32, #tpu.memory_space<vmem>>, %arg6: memref<128x32xf32, #tpu.memory_space<vmem>>) attributes {dimension_semantics = [#tpu.dimension_semantics<parallel>], iteration_bounds = array<i64: 1>, scalar_prefetch = 0 : i64, scratch_operands = 0 : i64, tpu.core_type = #tpu.core_type<tc>, window_params = [{transform_indices = @transform_0, window_bounds = array<i64: 128, 32>}, {pipeline_mode = #tpu.pipeline_mode<synchronous>, transform_indices = @transform_1, window_bounds = array<i64: 32, 32>}, {pipeline_mode = #tpu.pipeline_mode<synchronous>, transform_indices = @transform_2, window_bounds = array<i64: 1, 32>}, {pipeline_mode = #tpu.pipeline_mode<synchronous>, transform_indices = @transform_3, window_bounds = array<i64: 1, 32>}, {pipeline_mode = #tpu.pipeline_mode<synchronous>, transform_indices = @transform_4, window_bounds = array<i64: 1, 32>}, {transform_indices = @transform_5, window_bounds = array<i64: 128, 32>}]} {
    %c0 = arith.constant 0 : index
    %c0_0 = arith.constant 0 : index
    %0 = vector.load %arg1[%c0, %c0_0] : memref<128x32xbf16, #tpu.memory_space<vmem>>, vector<128x32xbf16>
    %c0_1 = arith.constant 0 : index
    %c0_2 = arith.constant 0 : index
    %1 = vector.load %arg2[%c0_1, %c0_2] : memref<32x32xbf16, #tpu.memory_space<vmem>>, vector<32x32xbf16>
    %c0_3 = arith.constant 0 : index
    %c0_4 = arith.constant 0 : index
    %2 = vector.load %arg3[%c0_3, %c0_4] : memref<1x32xf32, #tpu.memory_space<vmem>>, vector<1x32xf32>
    %c0_5 = arith.constant 0 : index
    %c0_6 = arith.constant 0 : index
    %3 = vector.load %arg4[%c0_5, %c0_6] : memref<1x32xf32, #tpu.memory_space<vmem>>, vector<1x32xf32>
    %c0_7 = arith.constant 0 : index
    %c0_8 = arith.constant 0 : index
    %4 = vector.load %arg5[%c0_7, %c0_8] : memref<1x32xf32, #tpu.memory_space<vmem>>, vector<1x32xf32>
    %cst = arith.constant dense<0.000000e+00> : vector<128x32xf32>
    %5 = tpu.matmul %0, %1, %cst {dimension_numbers = #tpu.dot_dimension_numbers<[1], [0], [0], [1], [0, 0, 1, 1], [], []>} : vector<128x32xbf16>, vector<32x32xbf16>, vector<128x32xf32> -> vector<128x32xf32>
    %6 = vector.broadcast %2 : vector<1x32xf32> to vector<128x32xf32>
    %7 = arith.addf %5, %6 : vector<128x32xf32>
    %cst_9 = arith.constant 5.000000e-01 : f32
    %8 = vector.broadcast %cst_9 : f32 to vector<128x32xf32>
    %9 = arith.mulf %7, %8 : vector<128x32xf32>
    %cst_10 = arith.constant 1.41421354 : f32
    %10 = vector.broadcast %cst_10 : f32 to vector<128x32xf32>
    %11 = arith.divf %7, %10 : vector<128x32xf32>
    %12 = math.erf %11 : vector<128x32xf32>
    %cst_11 = arith.constant 1.000000e+00 : f32
    %13 = vector.broadcast %cst_11 : f32 to vector<128x32xf32>
    %14 = arith.addf %13, %12 : vector<128x32xf32>
    %15 = arith.mulf %9, %14 : vector<128x32xf32>
    %cst_12 = arith.constant dense<0.000000e+00> : vector<128xf32>
    %16 = vector.multi_reduction <add>, %15, %cst_12 [1] : vector<128x32xf32> to vector<128xf32>
    %17 = vector.shape_cast %16 : vector<128xf32> to vector<128x1xf32>
    %cst_13 = arith.constant 3.200000e+01 : f32
    %18 = vector.broadcast %cst_13 : f32 to vector<128x1xf32>
    %19 = arith.divf %17, %18 : vector<128x1xf32>
    %20 = vector.broadcast %19 : vector<128x1xf32> to vector<128x32xf32>
    %21 = arith.subf %15, %20 : vector<128x32xf32>
    %22 = arith.mulf %21, %21 : vector<128x32xf32>
    %cst_14 = arith.constant dense<0.000000e+00> : vector<128xf32>
    %23 = vector.multi_reduction <add>, %22, %cst_14 [1] : vector<128x32xf32> to vector<128xf32>
    %24 = vector.shape_cast %23 : vector<128xf32> to vector<128x1xf32>
    %cst_15 = arith.constant 3.200000e+01 : f32
    %25 = vector.broadcast %cst_15 : f32 to vector<128x1xf32>
    %26 = arith.divf %24, %25 : vector<128x1xf32>
    %27 = vector.broadcast %19 : vector<128x1xf32> to vector<128x32xf32>
    %28 = arith.subf %15, %27 : vector<128x32xf32>
    %cst_16 = arith.constant 9.99999996E-13 : f32
    %29 = vector.broadcast %cst_16 : f32 to vector<128x1xf32>
    %30 = arith.addf %26, %29 : vector<128x1xf32>
    %31 = math.rsqrt %30 : vector<128x1xf32>
    %32 = vector.broadcast %31 : vector<128x1xf32> to vector<128x32xf32>
    %33 = arith.mulf %28, %32 : vector<128x32xf32>
    %34 = vector.broadcast %3 : vector<1x32xf32> to vector<128x32xf32>
    %35 = arith.mulf %33, %34 : vector<128x32xf32>
    %36 = vector.broadcast %4 : vector<1x32xf32> to vector<128x32xf32>
    %37 = arith.addf %35, %36 : vector<128x32xf32>
    %c0_17 = arith.constant 0 : index
    %c0_18 = arith.constant 0 : index
    %38 = vector.load %arg6[%c0_17, %c0_18] : memref<128x32xf32, #tpu.memory_space<vmem>>, vector<128x32xf32>
    tpu.vector_store %arg6[%c0_17, %c0_18], %37 {strides = array<i32>} : memref<128x32xf32, #tpu.memory_space<vmem>>, vector<128x32xf32>,
    return
  }
  func.func @transform_0(%arg0: i32) -> (i32, i32) {
    %c0_i32 = arith.constant 0 : i32
    %c0_i32_0 = arith.constant 0 : i32
    return %arg0, %c0_i32 : i32, i32
  }
  func.func @transform_1(%arg0: i32) -> (i32, i32) {
    %c0_i32 = arith.constant 0 : i32
    %c0_i32_0 = arith.constant 0 : i32
    %c0_i32_1 = arith.constant 0 : i32
    return %c0_i32, %c0_i32_0 : i32, i32
  }
  func.func @transform_2(%arg0: i32) -> (i32, i32) {
    %c0_i32 = arith.constant 0 : i32
    %c0_i32_0 = arith.constant 0 : i32
    %c0_i32_1 = arith.constant 0 : i32
    return %c0_i32, %c0_i32_0 : i32, i32
  }
  func.func @transform_3(%arg0: i32) -> (i32, i32) {
    %c0_i32 = arith.constant 0 : i32
    %c0_i32_0 = arith.constant 0 : i32
    %c0_i32_1 = arith.constant 0 : i32
    return %c0_i32, %c0_i32_0 : i32, i32
  }
  func.func @transform_4(%arg0: i32) -> (i32, i32) {
    %c0_i32 = arith.constant 0 : i32
    %c0_i32_0 = arith.constant 0 : i32
    %c0_i32_1 = arith.constant 0 : i32
    return %c0_i32, %c0_i32_0 : i32, i32
  }
  func.func @transform_5(%arg0: i32) -> (i32, i32) {
    %c0_i32 = arith.constant 0 : i32
    %c0_i32_0 = arith.constant 0 : i32
    return %arg0, %c0_i32 : i32, i32
  }
}

</mosaic_0001>

<llo_original>
// kernel: tpu_custom_call.1
$region0: #{tpu_custom_call.1}
  #allocation0 [shape = 'u32[]', space=smem, size = 0x4, offset = 0x4, fixed_abs, tag = 'smem constant byte address 0x4 - core index']
  #allocation1 [shape = 'u32[144,128]{1,0:T(1,128)}', space=vmem, size = 0x12000, scoped, tag = 'internal scratch']
  %s0 = inlined_call_operand.hbm [shape: bf16[128,32], index: 0, kind: input, shape index: {}]
  %s1 = inlined_call_operand.hbm [shape: bf16[32,32], index: 1, kind: input, shape index: {}]
  %s2 = inlined_call_operand.hbm [shape: f32[1,32], index: 2, kind: input, shape index: {}]
  %s3 = inlined_call_operand.hbm [shape: f32[1,32], index: 3, kind: input, shape index: {}]
  %s4 = inlined_call_operand.hbm [shape: f32[1,32], index: 4, kind: input, shape index: {}]
  %s5 = inlined_call_operand.hbm [shape: f32[128,32], index: 5, kind: output, shape index: {}]
  %s6 = sld [smem:[#allocation0]]
  $region50: #{tpu_custom_call.1} parent=0
    _
  %s8 = ssub.s32 1, %s6
  %s9 = scalar_select 0, %s8, %s6
  $region1: #{tpu_custom_call.1} parent=0
    #allocation2 [shape = 'u8[32768]{0}', space=vmem, size = 0x8000, scoped, tag = 'input window, operand 0, single buffered']
    #allocation3 [shape = 's32[1]{0}', space=sflag, size = 0x4, scoped, tag = 'scoped memory for tpu_custom_call.1']
    #allocation4 [shape = 's32[1]{0}', space=sflag, size = 0x4, scoped, tag = 'scoped memory for tpu_custom_call.1']
    #allocation5 [shape = 'u8[8192]{0}', space=vmem, size = 0x2000, scoped, tag = 'input window, operand 1, single buffered']
    #allocation6 [shape = 's32[1]{0}', space=sflag, size = 0x4, scoped, tag = 'scoped memory for tpu_custom_call.1']
    #allocation7 [shape = 'u8[512]{0}', space=vmem, size = 0x400, scoped, tag = 'input window, operand 2, single buffered']
    #allocation8 [shape = 'u8[512]{0}', space=vmem, size = 0x400, scoped, tag = 'input window, operand 3, single buffered']
    #allocation9 [shape = 's32[1]{0}', space=sflag, size = 0x4, scoped, tag = 'scoped memory for tpu_custom_call.1']
    #allocation10 [shape = 'u8[512]{0}', space=vmem, size = 0x400, scoped, tag = 'input window, operand 4, single buffered']
    #allocation11 [shape = 'u8[65536]{0}', space=vmem, size = 0x10000, scoped, tag = 'output window, operand 0, single buffered']
    %10 = vsyncpa [#allocation3], 0
    %11 = vsyncpa [#allocation6], 0
    %12 = vsyncpa [#allocation9], 0
    %13 = vsyncpa [#allocation4], 0
    // Predicated region
    $region2: #{tpu_custom_call.1} parent=1 // pred_check
      _
    $region3: #{tpu_custom_call.1} parent=1 // pred_check_branch
      %15 = sbr.rel (0) target = $region5
    $region4: #{tpu_custom_call.1} parent=1 // pred_region
      %s17 = ssub.s32 1024, 1024
      %18 = vsyncadd [#allocation3], %s17
      %s19 = sshll.u32 [#allocation2], 4
      %s20 = int_to_ptr.vmem [resolvable:$true] %s19
      %25 = dma.hbm_to_vmem [thread:$0]  %s0, 1024, %s20, [#allocation3], 64, 64, 4
    $region5: #{tpu_custom_call.1} parent=1 // pred_fallthru
      _
    // Predicated region
    $region6: #{tpu_custom_call.1} parent=1 // pred_check
      _
    $region7: #{tpu_custom_call.1} parent=1 // pred_check_branch
      %27 = sbr.rel (0) target = $region9
    $region8: #{tpu_custom_call.1} parent=1 // pred_region
      %s29 = ssub.s32 256, 256
      %30 = vsyncadd [#allocation6], %s29
      %s31 = sshll.u32 [#allocation5], 4
      %s32 = int_to_ptr.vmem [resolvable:$true] %s31
      %37 = dma.hbm_to_vmem [thread:$0]  %s1, 256, %s32, [#allocation6], 64, 64, 4
    $region9: #{tpu_custom_call.1} parent=1 // pred_fallthru
      _
    // Predicated region
    $region10: #{tpu_custom_call.1} parent=1 // pred_check
      _
    $region11: #{tpu_custom_call.1} parent=1 // pred_check_branch
      %39 = sbr.rel (0) target = $region13
    $region12: #{tpu_custom_call.1} parent=1 // pred_region
      %s41 = ssub.s32 16, 16
      %42 = vsyncadd [#allocation6], %s41
      %s44 = sshll.u32 [#allocation7], 4
      %s45 = int_to_ptr.vmem [resolvable:$true] %s44
      %47 = dma.hbm_to_vmem [thread:$0]  %s2, 16, %s45, [#allocation6]
    $region13: #{tpu_custom_call.1} parent=1 // pred_fallthru
      _
    // Predicated region
    $region14: #{tpu_custom_call.1} parent=1 // pred_check
      _
    $region15: #{tpu_custom_call.1} parent=1 // pred_check_branch
      %49 = sbr.rel (0) target = $region17
    $region16: #{tpu_custom_call.1} parent=1 // pred_region
      %s51 = ssub.s32 16, 16
      %52 = vsyncadd [#allocation9], %s51
      %s54 = sshll.u32 [#allocation8], 4
      %s55 = int_to_ptr.vmem [resolvable:$true] %s54
      %57 = dma.hbm_to_vmem [thread:$0]  %s3, 16, %s55, [#allocation9]
    $region17: #{tpu_custom_call.1} parent=1 // pred_fallthru
      _
    // Predicated region
    $region18: #{tpu_custom_call.1} parent=1 // pred_check
      _
    $region19: #{tpu_custom_call.1} parent=1 // pred_check_branch
      %59 = sbr.rel (0) target = $region21
    $region20: #{tpu_custom_call.1} parent=1 // pred_region
      %s61 = ssub.s32 16, 16
      %62 = vsyncadd [#allocation9], %s61
      %s64 = sshll.u32 [#allocation10], 4
      %s65 = int_to_ptr.vmem [resolvable:$true] %s64
      %67 = dma.hbm_to_vmem [thread:$0]  %s4, 16, %s65, [#allocation9]
    $region21: #{tpu_custom_call.1} parent=1 // pred_fallthru
      _
    // Predicated region
    $region22: #{tpu_custom_call.1} parent=1 // pred_check
      _
    $region23: #{tpu_custom_call.1} parent=1 // pred_check_branch
      %69 = sbr.rel (0) target = $region25
    $region24: #{tpu_custom_call.1} parent=1 // pred_region
      %70 = dma.done [#allocation3], 1024
    $region25: #{tpu_custom_call.1} parent=1 // pred_fallthru
      _
    // Predicated region
    $region26: #{tpu_custom_call.1} parent=1 // pred_check
      _
    $region27: #{tpu_custom_call.1} parent=1 // pred_check_branch
      %72 = sbr.rel (0) target = $region29
    $region28: #{tpu_custom_call.1} parent=1 // pred_region
      %73 = dma.done [#allocation6], 256
    $region29: #{tpu_custom_call.1} parent=1 // pred_fallthru
      _
    // Predicated region
    $region30: #{tpu_custom_call.1} parent=1 // pred_check
      _
    $region31: #{tpu_custom_call.1} parent=1 // pred_check_branch
      %75 = sbr.rel (0) target = $region33
    $region32: #{tpu_custom_call.1} parent=1 // pred_region
      %76 = dma.done [#allocation6], 16
    $region33: #{tpu_custom_call.1} parent=1 // pred_fallthru
      _
    // Predicated region
    $region34: #{tpu_custom_call.1} parent=1 // pred_check
      _
    $region35: #{tpu_custom_call.1} parent=1 // pred_check_branch
      %78 = sbr.rel (0) target = $region37
    $region36: #{tpu_custom_call.1} parent=1 // pred_region
      %79 = dma.done [#allocation9], 16
    $region37: #{tpu_custom_call.1} parent=1 // pred_fallthru
      _
    // Predicated region
    $region38: #{tpu_custom_call.1} parent=1 // pred_check
      _
    $region39: #{tpu_custom_call.1} parent=1 // pred_check_branch
      %81 = sbr.rel (0) target = $region41
    $region40: #{tpu_custom_call.1} parent=1 // pred_region
      %82 = dma.done [#allocation9], 16
    $region41: #{tpu_custom_call.1} parent=1 // pred_fallthru
      _
    %v84 = vld [vmem:[#allocation2] sm:$0xf]
    %v85 = vld [vmem:[#allocation2 + $0x4] sm:$0xf]
    %v86 = vld [vmem:[#allocation2 + $0x8] sm:$0xf]
    %v87 = vld [vmem:[#allocation2 + $0xc] sm:$0xf]
    %v88 = vld [vmem:[#allocation2 + $0x10] sm:$0xf]
    %v89 = vld [vmem:[#allocation2 + $0x14] sm:$0xf]
    %v90 = vld [vmem:[#allocation2 + $0x18] sm:$0xf]
    %v91 = vld [vmem:[#allocation2 + $0x1c] sm:$0xf]
    %v92 = vld [vmem:[#allocation2 + $0x20] sm:$0xf]
    %v93 = vld [vmem:[#allocation2 + $0x24] sm:$0xf]
    %v94 = vld [vmem:[#allocation2 + $0x28] sm:$0xf]
    %v95 = vld [vmem:[#allocation2 + $0x2c] sm:$0xf]
    %v96 = vld [vmem:[#allocation2 + $0x30] sm:$0xf]
    %v97 = vld [vmem:[#allocation2 + $0x34] sm:$0xf]
    %v98 = vld [vmem:[#allocation2 + $0x38] sm:$0xf]
    %v99 = vld [vmem:[#allocation2 + $0x3c] sm:$0xf]
    %v100 = vld [vmem:[#allocation5] sm:$0xf]
    %v101 = vld [vmem:[#allocation5 + $0x4] sm:$0xf]
    %v102 = vld [vmem:[#allocation5 + $0x8] sm:$0xf]
    %v103 = vld [vmem:[#allocation5 + $0xc] sm:$0xf]
    %v104 = vld [vmem:[#allocation7] sm:$0x1]
    %v105 = vld [vmem:[#allocation8] sm:$0x1]
    %v106 = vld [vmem:[#allocation10] sm:$0x1]
    %v108 = vlaneseq
    %v109 = vshrl.u32 %v108, 7
    %v110 = vsub.s32 0, %v109
    %v111 = vrot.slane %v104, %v110
    %v129 = vunpack.c.l.b16 %v84
    %v130 = vunpack.c.l.b16 %v85
    %v131 = vunpack.c.l.b16 %v86
    %v132 = vunpack.c.l.b16 %v87
    %v133 = vunpack.c.l.b16 %v88
    %v134 = vunpack.c.l.b16 %v89
    %v135 = vunpack.c.l.b16 %v90
    %v136 = vunpack.c.l.b16 %v91
    %v137 = vunpack.c.l.b16 %v92
    %v138 = vunpack.c.l.b16 %v93
    %v139 = vunpack.c.l.b16 %v94
    %v140 = vunpack.c.l.b16 %v95
    %v141 = vunpack.c.l.b16 %v96
    %v142 = vunpack.c.l.b16 %v97
    %v143 = vunpack.c.l.b16 %v98
    %v144 = vunpack.c.l.b16 %v99
    %v145 = vpack.c.b16 %v130, %v129
    %v146 = vpack.c.b16 %v132, %v131
    %v147 = vpack.c.b16 %v134, %v133
    %v148 = vpack.c.b16 %v136, %v135
    %v149 = vpack.c.b16 %v138, %v137
    %v150 = vpack.c.b16 %v140, %v139
    %v151 = vpack.c.b16 %v142, %v141
    %v152 = vpack.c.b16 %v144, %v143
    %v157 = vunpack.c.l.b16 %v100
    %v158 = vunpack.c.l.b16 %v101
    %v159 = vunpack.c.l.b16 %v102
    %v160 = vunpack.c.l.b16 %v103
    %v161 = vpack.c.b16 %v158, %v157
    %v162 = vpack.c.b16 %v160, %v159
    %vm165 = vcmask 261120
    %v167 = vsel %vm165, %v145, 0
    %v170 = vsel %vm165, %v146, 0
    %v173 = vsel %vm165, %v147, 0
    %v176 = vsel %vm165, %v148, 0
    %v179 = vsel %vm165, %v149, 0
    %v182 = vsel %vm165, %v150, 0
    %v185 = vsel %vm165, %v151, 0
    %v188 = vsel %vm165, %v152, 0
    %190 = vmatprep.subr.bf16.mxu0 0
    %191 = vmatpush1.bf16.msra.mxu0 %v161
    %192 = vmatprep.subr.bf16.mxu0 0
    %193 = vmatpush1.bf16.msra.mxu0 %v162
    %194 = vmatprep.subr.bf16.mxu0 0
    %195 = vmatpush1.bf16.msra.mxu0 0
    %196 = vmatprep.subr.bf16.mxu0 0
    %197 = vmatpush1.bf16.msra.mxu0 0
    %198 = vmatprep.subr.bf16.mxu0 0
    %199 = vmatpush1.bf16.msra.mxu0 0
    %200 = vmatprep.subr.bf16.mxu0 0
    %201 = vmatpush1.bf16.msra.mxu0 0
    %202 = vmatprep.subr.bf16.mxu0 0
    %203 = vmatpush1.bf16.msra.mxu0 0
    %204 = vmatprep.subr.bf16.mxu0 0
    %205 = vmatpush1.bf16.msra.mxu0 0
    %206 = vmatprep.subr.bf16.mxu0 0
    %207 = vmatpush1.bf16.msra.mxu0 0
    %208 = vmatprep.subr.bf16.mxu0 0
    %209 = vmatpush1.bf16.msra.mxu0 0
    %210 = vmatprep.subr.bf16.mxu0 0
    %211 = vmatpush1.bf16.msra.mxu0 0
    %212 = vmatprep.subr.bf16.mxu0 0
    %213 = vmatpush1.bf16.msra.mxu0 0
    %214 = vmatprep.subr.bf16.mxu0 0
    %215 = vmatpush1.bf16.msra.mxu0 0
    %216 = vmatprep.subr.bf16.mxu0 0
    %217 = vmatpush1.bf16.msra.mxu0 0
    %218 = vmatprep.subr.bf16.mxu0 0
    %219 = vmatpush1.bf16.msra.mxu0 0
    %220 = vmatprep.subr.bf16.mxu0 0
    %221 = vmatpush1.bf16.msra.mxu0 0
    %222 = vmatprep.mubr.bf16.mxu0 0
    %223 = vmatmul.mubr.bf16.gmra.mrb[0].mxu0 %v167
    %v224 = vpop.f32.mrb[0].mxu0
    %v225 = vadd.f32 %v111, %v224
    %v226 = vpop.f32.mrb[0].mxu0
    %v227 = vpop.f32.mrb[0].mxu0
    %v228 = vadd.f32 %v111, %v227
    %v229 = vpop.f32.mrb[0].mxu0
    %230 = vmatprep.mubr.bf16.mxu0 0
    %231 = vmatmul.mubr.bf16.gmra.mrb[0].mxu0 %v170
    %v232 = vpop.f32.mrb[0].mxu0
    %v233 = vadd.f32 %v111, %v232
    %v234 = vpop.f32.mrb[0].mxu0
    %v235 = vpop.f32.mrb[0].mxu0
    %v236 = vadd.f32 %v111, %v235
    %v237 = vpop.f32.mrb[0].mxu0
    %238 = vmatprep.mubr.bf16.mxu0 0
    %239 = vmatmul.mubr.bf16.gmra.mrb[0].mxu0 %v173
    %v240 = vpop.f32.mrb[0].mxu0
    %v241 = vadd.f32 %v111, %v240
    %v242 = vpop.f32.mrb[0].mxu0
    %v243 = vpop.f32.mrb[0].mxu0
    %v244 = vadd.f32 %v111, %v243
    %v245 = vpop.f32.mrb[0].mxu0
    %246 = vmatprep.mubr.bf16.mxu0 0
    %247 = vmatmul.mubr.bf16.gmra.mrb[0].mxu0 %v176
    %v248 = vpop.f32.mrb[0].mxu0
    %v249 = vadd.f32 %v111, %v248
    %v250 = vpop.f32.mrb[0].mxu0
    %v251 = vpop.f32.mrb[0].mxu0
    %v252 = vadd.f32 %v111, %v251
    %v253 = vpop.f32.mrb[0].mxu0
    %254 = vmatprep.mubr.bf16.mxu0 0
    %255 = vmatmul.mubr.bf16.gmra.mrb[0].mxu0 %v179
    %v256 = vpop.f32.mrb[0].mxu0
    %v257 = vadd.f32 %v111, %v256
    %v258 = vpop.f32.mrb[0].mxu0
    %v259 = vpop.f32.mrb[0].mxu0
    %v260 = vadd.f32 %v111, %v259
    %v261 = vpop.f32.mrb[0].mxu0
    %262 = vmatprep.mubr.bf16.mxu0 0
    %263 = vmatmul.mubr.bf16.gmra.mrb[0].mxu0 %v182
    %v264 = vpop.f32.mrb[0].mxu0
    %v265 = vadd.f32 %v111, %v264
    %v266 = vpop.f32.mrb[0].mxu0
    %v267 = vpop.f32.mrb[0].mxu0
    %v268 = vadd.f32 %v111, %v267
    %v269 = vpop.f32.mrb[0].mxu0
    %270 = vmatprep.mubr.bf16.mxu0 0
    %271 = vmatmul.mubr.bf16.gmra.mrb[0].mxu0 %v185
    %v272 = vpop.f32.mrb[0].mxu0
    %v273 = vadd.f32 %v111, %v272
    %v274 = vpop.f32.mrb[0].mxu0
    %v275 = vpop.f32.mrb[0].mxu0
    %v276 = vadd.f32 %v111, %v275
    %v277 = vpop.f32.mrb[0].mxu0
    %278 = vmatprep.mubr.bf16.mxu0 0
    %279 = vmatmul.mubr.bf16.gmra.mrb[0].mxu0 %v188
    %v280 = vpop.f32.mrb[0].mxu0
    %v281 = vadd.f32 %v111, %v280
    %v282 = vpop.f32.mrb[0].mxu0
    %v283 = vpop.f32.mrb[0].mxu0
    %v284 = vadd.f32 %v111, %v283
    %v285 = vpop.f32.mrb[0].mxu0
    %286 = vdwg.mxu0
    %v287 = vmul.f32 %v225, 0.5
    %v288 = vmul.f32 %v228, 0.5
    %v289 = vmul.f32 %v233, 0.5
    %v290 = vmul.f32 %v236, 0.5
    %v291 = vmul.f32 %v241, 0.5
    %v292 = vmul.f32 %v244, 0.5
    %v293 = vmul.f32 %v249, 0.5
    %v294 = vmul.f32 %v252, 0.5
    %v295 = vmul.f32 %v257, 0.5
    %v296 = vmul.f32 %v260, 0.5
    %v297 = vmul.f32 %v265, 0.5
    %v298 = vmul.f32 %v268, 0.5
    %v299 = vmul.f32 %v273, 0.5
    %v300 = vmul.f32 %v276, 0.5
    %v301 = vmul.f32 %v281, 0.5
    %v302 = vmul.f32 %v284, 0.5
    %v303 = vrcp.pop 1.4142135
    %v304 = vmul.f32 %v225, %v303
    %v305 = vmul.f32 %v228, %v303
    %v306 = vmul.f32 %v233, %v303
    %v307 = vmul.f32 %v236, %v303
    %v308 = vmul.f32 %v241, %v303
    %v309 = vmul.f32 %v244, %v303
    %v310 = vmul.f32 %v249, %v303
    %v311 = vmul.f32 %v252, %v303
    %v312 = vmul.f32 %v257, %v303
    %v313 = vmul.f32 %v260, %v303
    %v314 = vmul.f32 %v265, %v303
    %v315 = vmul.f32 %v268, %v303
    %v316 = vmul.f32 %v273, %v303
    %v317 = vmul.f32 %v276, %v303
    %v318 = vmul.f32 %v281, %v303
    %v319 = vmul.f32 %v284, %v303
    %v320 = verf.f32.pop %v304
    %v321 = verf.f32.pop %v305
    %v322 = verf.f32.pop %v306
    %v323 = verf.f32.pop %v307
    %v324 = verf.f32.pop %v308
    %v325 = verf.f32.pop %v309
    %v326 = verf.f32.pop %v310
    %v327 = verf.f32.pop %v311
    %v328 = verf.f32.pop %v312
    %v329 = verf.f32.pop %v313
    %v330 = verf.f32.pop %v314
    %v331 = verf.f32.pop %v315
    %v332 = verf.f32.pop %v316
    %v333 = verf.f32.pop %v317
    %v334 = verf.f32.pop %v318
    %v335 = verf.f32.pop %v319
    %v336 = vadd.f32 %v320, 1.0
    %v337 = vadd.f32 %v321, 1.0
    %v338 = vadd.f32 %v322, 1.0
    %v339 = vadd.f32 %v323, 1.0
    %v340 = vadd.f32 %v324, 1.0
    %v341 = vadd.f32 %v325, 1.0
    %v342 = vadd.f32 %v326, 1.0
    %v343 = vadd.f32 %v327, 1.0
    %v344 = vadd.f32 %v328, 1.0
    %v345 = vadd.f32 %v329, 1.0
    %v346 = vadd.f32 %v330, 1.0
    %v347 = vadd.f32 %v331, 1.0
    %v348 = vadd.f32 %v332, 1.0
    %v349 = vadd.f32 %v333, 1.0
    %v350 = vadd.f32 %v334, 1.0
    %v351 = vadd.f32 %v335, 1.0
    %v352 = vmul.f32 %v287, %v336
    %v353 = vmul.f32 %v288, %v337
    %v354 = vmul.f32 %v289, %v338
    %v355 = vmul.f32 %v290, %v339
    %v356 = vmul.f32 %v291, %v340
    %v357 = vmul.f32 %v292, %v341
    %v358 = vmul.f32 %v293, %v342
    %v359 = vmul.f32 %v294, %v343
    %v360 = vmul.f32 %v295, %v344
    %v361 = vmul.f32 %v296, %v345
    %v362 = vmul.f32 %v297, %v346
    %v363 = vmul.f32 %v298, %v347
    %v364 = vmul.f32 %v299, %v348
    %v365 = vmul.f32 %v300, %v349
    %v366 = vmul.f32 %v301, %v350
    %v367 = vmul.f32 %v302, %v351
    %v368 = vsel %vm165, %v352, 0.0
    %369 = vadd.xlane.f32.xlu0 %v368
    %v370 = vpop.xlane.xlu0 %369
    %v371 = vsel %vm165, %v353, 0.0
    %372 = vadd.xlane.f32.xlu0 %v371
    %v373 = vpop.xlane.xlu0 %372
    %v374 = vsel %vm165, %v354, 0.0
    %375 = vadd.xlane.f32.xlu0 %v374
    %v376 = vpop.xlane.xlu0 %375
    %v377 = vsel %vm165, %v355, 0.0
    %378 = vadd.xlane.f32.xlu0 %v377
    %v379 = vpop.xlane.xlu0 %378
    %v380 = vsel %vm165, %v356, 0.0
    %381 = vadd.xlane.f32.xlu0 %v380
    %v382 = vpop.xlane.xlu0 %381
    %v383 = vsel %vm165, %v357, 0.0
    %384 = vadd.xlane.f32.xlu0 %v383
    %v385 = vpop.xlane.xlu0 %384
    %v386 = vsel %vm165, %v358, 0.0
    %387 = vadd.xlane.f32.xlu0 %v386
    %v388 = vpop.xlane.xlu0 %387
    %v389 = vsel %vm165, %v359, 0.0
    %390 = vadd.xlane.f32.xlu0 %v389
    %v391 = vpop.xlane.xlu0 %390
    %v392 = vsel %vm165, %v360, 0.0
    %393 = vadd.xlane.f32.xlu0 %v392
    %v394 = vpop.xlane.xlu0 %393
    %v395 = vsel %vm165, %v361, 0.0
    %396 = vadd.xlane.f32.xlu0 %v395
    %v397 = vpop.xlane.xlu0 %396
    %v398 = vsel %vm165, %v362, 0.0
    %399 = vadd.xlane.f32.xlu0 %v398
    %v400 = vpop.xlane.xlu0 %399
    %v401 = vsel %vm165, %v363, 0.0
    %402 = vadd.xlane.f32.xlu0 %v401
    %v403 = vpop.xlane.xlu0 %402
    %v404 = vsel %vm165, %v364, 0.0
    %405 = vadd.xlane.f32.xlu0 %v404
    %v406 = vpop.xlane.xlu0 %405
    %v407 = vsel %vm165, %v365, 0.0
    %408 = vadd.xlane.f32.xlu0 %v407
    %v409 = vpop.xlane.xlu0 %408
    %v410 = vsel %vm165, %v366, 0.0
    %411 = vadd.xlane.f32.xlu0 %v410
    %v412 = vpop.xlane.xlu0 %411
    %v413 = vsel %vm165, %v367, 0.0
    %414 = vadd.xlane.f32.xlu0 %v413
    %v415 = vpop.xlane.xlu0 %414
    %v416 = vrcp.pop 32.0
    %v417 = vmul.f32 %v370, %v416
    %v418 = vmul.f32 %v373, %v416
    %v419 = vmul.f32 %v376, %v416
    %v420 = vmul.f32 %v379, %v416
    %v421 = vmul.f32 %v382, %v416
    %v422 = vmul.f32 %v385, %v416
    %v423 = vmul.f32 %v388, %v416
    %v424 = vmul.f32 %v391, %v416
    %v425 = vmul.f32 %v394, %v416
    %v426 = vmul.f32 %v397, %v416
    %v427 = vmul.f32 %v400, %v416
    %v428 = vmul.f32 %v403, %v416
    %v429 = vmul.f32 %v406, %v416
    %v430 = vmul.f32 %v409, %v416
    %v431 = vmul.f32 %v412, %v416
    %v432 = vmul.f32 %v415, %v416
    %v433 = vsub.f32 %v352, %v417
    %v434 = vsub.f32 %v353, %v418
    %v435 = vsub.f32 %v354, %v419
    %v436 = vsub.f32 %v355, %v420
    %v437 = vsub.f32 %v356, %v421
    %v438 = vsub.f32 %v357, %v422
    %v439 = vsub.f32 %v358, %v423
    %v440 = vsub.f32 %v359, %v424
    %v441 = vsub.f32 %v360, %v425
    %v442 = vsub.f32 %v361, %v426
    %v443 = vsub.f32 %v362, %v427
    %v444 = vsub.f32 %v363, %v428
    %v445 = vsub.f32 %v364, %v429
    %v446 = vsub.f32 %v365, %v430
    %v447 = vsub.f32 %v366, %v431
    %v448 = vsub.f32 %v367, %v432
    %v449 = vmul.f32 %v433, %v433
    %v450 = vmul.f32 %v434, %v434
    %v451 = vmul.f32 %v435, %v435
    %v452 = vmul.f32 %v436, %v436
    %v453 = vmul.f32 %v437, %v437
    %v454 = vmul.f32 %v438, %v438
    %v455 = vmul.f32 %v439, %v439
    %v456 = vmul.f32 %v440, %v440
    %v457 = vmul.f32 %v441, %v441
    %v458 = vmul.f32 %v442, %v442
    %v459 = vmul.f32 %v443, %v443
    %v460 = vmul.f32 %v444, %v444
    %v461 = vmul.f32 %v445, %v445
    %v462 = vmul.f32 %v446, %v446
    %v463 = vmul.f32 %v447, %v447
    %v464 = vmul.f32 %v448, %v448
    %v465 = vsel %vm165, %v449, 0.0
    %466 = vadd.xlane.f32.xlu0 %v465
    %v467 = vpop.xlane.xlu0 %466
    %v468 = vsel %vm165, %v450, 0.0
    %469 = vadd.xlane.f32.xlu0 %v468
    %v470 = vpop.xlane.xlu0 %469
    %v471 = vsel %vm165, %v451, 0.0
    %472 = vadd.xlane.f32.xlu0 %v471
    %v473 = vpop.xlane.xlu0 %472
    %v474 = vsel %vm165, %v452, 0.0
    %475 = vadd.xlane.f32.xlu0 %v474
    %v476 = vpop.xlane.xlu0 %475
    %v477 = vsel %vm165, %v453, 0.0
    %478 = vadd.xlane.f32.xlu0 %v477
    %v479 = vpop.xlane.xlu0 %478
    %v480 = vsel %vm165, %v454, 0.0
    %481 = vadd.xlane.f32.xlu0 %v480
    %v482 = vpop.xlane.xlu0 %481
    %v483 = vsel %vm165, %v455, 0.0
    %484 = vadd.xlane.f32.xlu0 %v483
    %v485 = vpop.xlane.xlu0 %484
    %v486 = vsel %vm165, %v456, 0.0
    %487 = vadd.xlane.f32.xlu0 %v486
    %v488 = vpop.xlane.xlu0 %487
    %v489 = vsel %vm165, %v457, 0.0
    %490 = vadd.xlane.f32.xlu0 %v489
    %v491 = vpop.xlane.xlu0 %490
    %v492 = vsel %vm165, %v458, 0.0
    %493 = vadd.xlane.f32.xlu0 %v492
    %v494 = vpop.xlane.xlu0 %493
    %v495 = vsel %vm165, %v459, 0.0
    %496 = vadd.xlane.f32.xlu0 %v495
    %v497 = vpop.xlane.xlu0 %496
    %v498 = vsel %vm165, %v460, 0.0
    %499 = vadd.xlane.f32.xlu0 %v498
    %v500 = vpop.xlane.xlu0 %499
    %v501 = vsel %vm165, %v461, 0.0
    %502 = vadd.xlane.f32.xlu0 %v501
    %v503 = vpop.xlane.xlu0 %502
    %v504 = vsel %vm165, %v462, 0.0
    %505 = vadd.xlane.f32.xlu0 %v504
    %v506 = vpop.xlane.xlu0 %505
    %v507 = vsel %vm165, %v463, 0.0
    %508 = vadd.xlane.f32.xlu0 %v507
    %v509 = vpop.xlane.xlu0 %508
    %v510 = vsel %vm165, %v464, 0.0
    %511 = vadd.xlane.f32.xlu0 %v510
    %v512 = vpop.xlane.xlu0 %511
    %v513 = vmul.f32 %v467, %v416
    %v514 = vmul.f32 %v470, %v416
    %v515 = vmul.f32 %v473, %v416
    %v516 = vmul.f32 %v476, %v416
    %v517 = vmul.f32 %v479, %v416
    %v518 = vmul.f32 %v482, %v416
    %v519 = vmul.f32 %v485, %v416
    %v520 = vmul.f32 %v488, %v416
    %v521 = vmul.f32 %v491, %v416
    %v522 = vmul.f32 %v494, %v416
    %v523 = vmul.f32 %v497, %v416
    %v524 = vmul.f32 %v500, %v416
    %v525 = vmul.f32 %v503, %v416
    %v526 = vmul.f32 %v506, %v416
    %v527 = vmul.f32 %v509, %v416
    %v528 = vmul.f32 %v512, %v416
    %v529 = vadd.f32 %v513, 1e-12
    %v530 = vadd.f32 %v514, 1e-12
    %v531 = vadd.f32 %v515, 1e-12
    %v532 = vadd.f32 %v516, 1e-12
    %v533 = vadd.f32 %v517, 1e-12
    %v534 = vadd.f32 %v518, 1e-12
    %v535 = vadd.f32 %v519, 1e-12
    %v536 = vadd.f32 %v520, 1e-12
    %v537 = vadd.f32 %v521, 1e-12
    %v538 = vadd.f32 %v522, 1e-12
    %v539 = vadd.f32 %v523, 1e-12
    %v540 = vadd.f32 %v524, 1e-12
    %v541 = vadd.f32 %v525, 1e-12
    %v542 = vadd.f32 %v526, 1e-12
    %v543 = vadd.f32 %v527, 1e-12
    %v544 = vadd.f32 %v528, 1e-12
    %v545 = vrsqrt.pop %v529
    %v546 = vrsqrt.pop %v530
    %v547 = vrsqrt.pop %v531
    %v548 = vrsqrt.pop %v532
    %v549 = vrsqrt.pop %v533
    %v550 = vrsqrt.pop %v534
    %v551 = vrsqrt.pop %v535
    %v552 = vrsqrt.pop %v536
    %v553 = vrsqrt.pop %v537
    %v554 = vrsqrt.pop %v538
    %v555 = vrsqrt.pop %v539
    %v556 = vrsqrt.pop %v540
    %v557 = vrsqrt.pop %v541
    %v558 = vrsqrt.pop %v542
    %v559 = vrsqrt.pop %v543
    %v560 = vrsqrt.pop %v544
    %v561 = vmul.f32 %v433, %v545
    %v562 = vmul.f32 %v434, %v546
    %v563 = vmul.f32 %v435, %v547
    %v564 = vmul.f32 %v436, %v548
    %v565 = vmul.f32 %v437, %v549
    %v566 = vmul.f32 %v438, %v550
    %v567 = vmul.f32 %v439, %v551
    %v568 = vmul.f32 %v440, %v552
    %v569 = vmul.f32 %v441, %v553
    %v570 = vmul.f32 %v442, %v554
    %v571 = vmul.f32 %v443, %v555
    %v572 = vmul.f32 %v444, %v556
    %v573 = vmul.f32 %v445, %v557
    %v574 = vmul.f32 %v446, %v558
    %v575 = vmul.f32 %v447, %v559
    %v576 = vmul.f32 %v448, %v560
    %v578 = vlaneseq
    %v579 = vshrl.u32 %v578, 7
    %v580 = vsub.s32 0, %v579
    %v581 = vrot.slane %v105, %v580
    %v583 = vmul.f32 %v561, %v581
    %v584 = vmul.f32 %v562, %v581
    %v585 = vmul.f32 %v563, %v581
    %v586 = vmul.f32 %v564, %v581
    %v587 = vmul.f32 %v565, %v581
    %v588 = vmul.f32 %v566, %v581
    %v589 = vmul.f32 %v567, %v581
    %v590 = vmul.f32 %v568, %v581
    %v591 = vmul.f32 %v569, %v581
    %v592 = vmul.f32 %v570, %v581
    %v593 = vmul.f32 %v571, %v581
    %v594 = vmul.f32 %v572, %v581
    %v595 = vmul.f32 %v573, %v581
    %v596 = vmul.f32 %v574, %v581
    %v597 = vmul.f32 %v575, %v581
    %v598 = vmul.f32 %v576, %v581
    %v600 = vlaneseq
    %v601 = vshrl.u32 %v600, 7
    %v602 = vsub.s32 0, %v601
    %v603 = vrot.slane %v106, %v602
    %v605 = vadd.f32 %v583, %v603
    %v606 = vadd.f32 %v584, %v603
    %v607 = vadd.f32 %v585, %v603
    %v608 = vadd.f32 %v586, %v603
    %v609 = vadd.f32 %v587, %v603
    %v610 = vadd.f32 %v588, %v603
    %v611 = vadd.f32 %v589, %v603
    %v612 = vadd.f32 %v590, %v603
    %v613 = vadd.f32 %v591, %v603
    %v614 = vadd.f32 %v592, %v603
    %v615 = vadd.f32 %v593, %v603
    %v616 = vadd.f32 %v594, %v603
    %v617 = vadd.f32 %v595, %v603
    %v618 = vadd.f32 %v596, %v603
    %v619 = vadd.f32 %v597, %v603
    %v620 = vadd.f32 %v598, %v603
    %621 = vst.msk [vmem:[#allocation11] sm:$0xff] %vm165, %v605
    %622 = vst.msk [vmem:[#allocation11 + $0x8] sm:$0xff] %vm165, %v606
    %623 = vst.msk [vmem:[#allocation11 + $0x10] sm:$0xff] %vm165, %v607
    %624 = vst.msk [vmem:[#allocation11 + $0x18] sm:$0xff] %vm165, %v608
    %625 = vst.msk [vmem:[#allocation11 + $0x20] sm:$0xff] %vm165, %v609
    %626 = vst.msk [vmem:[#allocation11 + $0x28] sm:$0xff] %vm165, %v610
    %627 = vst.msk [vmem:[#allocation11 + $0x30] sm:$0xff] %vm165, %v611
    %628 = vst.msk [vmem:[#allocation11 + $0x38] sm:$0xff] %vm165, %v612
    %629 = vst.msk [vmem:[#allocation11 + $0x40] sm:$0xff] %vm165, %v613
    %630 = vst.msk [vmem:[#allocation11 + $0x48] sm:$0xff] %vm165, %v614
    %631 = vst.msk [vmem:[#allocation11 + $0x50] sm:$0xff] %vm165, %v615
    %632 = vst.msk [vmem:[#allocation11 + $0x58] sm:$0xff] %vm165, %v616
    %633 = vst.msk [vmem:[#allocation11 + $0x60] sm:$0xff] %vm165, %v617
    %634 = vst.msk [vmem:[#allocation11 + $0x68] sm:$0xff] %vm165, %v618
    %635 = vst.msk [vmem:[#allocation11 + $0x70] sm:$0xff] %vm165, %v619
    %636 = vst.msk [vmem:[#allocation11 + $0x78] sm:$0xff] %vm165, %v620
    // Predicated region
    $region42: #{tpu_custom_call.1} parent=1 // pred_check
      _
    $region43: #{tpu_custom_call.1} parent=1 // pred_check_branch
      %638 = sbr.rel (0) target = $region45
    $region44: #{tpu_custom_call.1} parent=1 // pred_region
      %s640 = ssub.s32 2048, 2048
      %641 = vsyncadd [#allocation4], %s640
      %s642 = sshll.u32 [#allocation11], 4
      %s643 = int_to_ptr.vmem [resolvable:$true] %s642
      %648 = dma.vmem_to_hbm [thread:$0]  %s643, 2048, %s5, [#allocation4], 128, 128, 8
    $region45: #{tpu_custom_call.1} parent=1 // pred_fallthru
      _
    // Predicated region
    $region46: #{tpu_custom_call.1} parent=1 // pred_check
      _
    $region47: #{tpu_custom_call.1} parent=1 // pred_check_branch
      %650 = sbr.rel (0) target = $region49
    $region48: #{tpu_custom_call.1} parent=1 // pred_region
      %651 = dma.done [#allocation4], 2048
    $region49: #{tpu_custom_call.1} parent=1 // pred_fallthru
      _
    %652 = vsyncpa [#allocation3], 1
    %653 = vsyncpa [#allocation6], 1
    %654 = vsyncpa [#allocation9], 1
    %655 = vsyncpa [#allocation4], 1

</llo_original>
